<compile_context>
chip_gen: v6e
topology: v6e:2x2x1
jax: 0.10.0
libtpu: 0.0.40
codegen_flags: <defaults>
</compile_context>

<pallas_src>
import functools

import jax
import jax.numpy as jnp
from jax.experimental import pallas as pl
from jax.experimental.pallas import tpu as pltpu


def _round_up(n, m):
    return ((n + m - 1) // m) * m


def mlp_kernel(x_ref, w1_ref, b1_ref, w2_ref, b2_ref, w3_ref, b3_ref, o_ref):
    # Full MLP on one (TB, 42) batch tile: 3 MXU matmuls + VPU bias/ReLU.
    # Weights are the same resident VMEM blocks every grid step.
    x = x_ref[...]                                                     # (TB, 42) f32
    h1 = jnp.dot(x, w1_ref[...], preferred_element_type=jnp.float32) + b1_ref[...]
    h1 = jnp.maximum(h1, 0.0)                                          # ReLU
    h2 = jnp.dot(h1, w2_ref[...], preferred_element_type=jnp.float32) + b2_ref[...]
    h2 = jnp.maximum(h2, 0.0)                                          # ReLU
    out = jnp.dot(h2, w3_ref[...], preferred_element_type=jnp.float32) + b3_ref[...]
    o_ref[...] = out.astype(o_ref.dtype)                               # (TB, C) store


def _batch_axis_semantics(num_steps):
    """CORE_PARALLEL splits the batch grid across v7x's 2 TensorCores.

    It's only selected on v7x and only when there are >=2 grid steps; on
    v5e/v6e (single TC) we keep the plain "parallel" annotation.
    """
    try:
        kind = jax.devices()[0].device_kind.lower()
    except Exception:
        kind = ""
    if "v7" in kind and num_steps >= 2:
        return (pltpu.CORE_PARALLEL,)
    return ("parallel",)


@functools.partial(jax.jit, static_argnames=("tb",))
def hand_sign_classifier(x, params, *, tb=2048):
    """Forward pass of HandSignClassifier.

    x: (B, 42) float32
    params: dict of w1 (42,64), b1 (1,64), w2 (64,64), b2 (1,64),
            w3 (64,C), b3 (1,C)
    returns: (B, C) float32 logits
    """
    B, K = x.shape
    C = params["w3"].shape[1]

    # Batch tile: multiple of 8 sublanes; capped for small batches.
    TB = min(tb, _round_up(B, 8))
    num_steps = pl.cdiv(B, TB)        # ragged last tile handled by Pallas masking

    # Weights/biases: constant block index -> fetched once, VMEM-resident.
    const2d = lambda shape: pl.BlockSpec(shape, lambda i: (0, 0))

    return pl.pallas_call(
        mlp_kernel,
        out_shape=jax.ShapeDtypeStruct((B, C), jnp.float32),
        grid=(num_steps,),
        in_specs=[
            pl.BlockSpec((TB, K), lambda i: (i, 0)),      # x: streamed per step
            const2d(params["w1"].shape), const2d(params["b1"].shape),
            const2d(params["w2"].shape), const2d(params["b2"].shape),
            const2d(params["w3"].shape), const2d(params["b3"].shape),
        ],
        out_specs=pl.BlockSpec((TB, C), lambda i: (i, 0)),
        compiler_params=pltpu.CompilerParams(
            dimension_semantics=_batch_axis_semantics(num_steps),
        ),
    )(x, params["w1"], params["b1"], params["w2"], params["b2"],
      params["w3"], params["b3"])


def init_params(key, num_classes):
    """Deterministic init matching the PyTorch module's layer shapes.

    PyTorch nn.Linear(in, out) holds W of shape (out, in); we store the
    transpose (in, out) so the kernel computes x @ W directly.
    """
    k1, k2, k3, k4, k5, k6 = jax.random.split(key, 6)

    def linear(kw, kb, fan_in, fan_out):
        bound = 1.0 / jnp.sqrt(fan_in)
        w = jax.random.uniform(kw, (fan_in, fan_out), jnp.float32, -bound, bound)
        b = jax.random.uniform(kb, (1, fan_out), jnp.float32, -bound, bound)
        return w, b

    w1, b1 = linear(k1, k2, 42, 64)
    w2, b2 = linear(k3, k4, 64, 64)
    w3, b3 = linear(k5, k6, 64, num_classes)
    return {"w1": w1, "b1": b1, "w2": w2, "b2": b2, "w3": w3, "b3": b3}


def reference_forward(x, p):
    h1 = jnp.maximum(x @ p["w1"] + p["b1"], 0.0)
    h2 = jnp.maximum(h1 @ p["w2"] + p["b2"], 0.0)
    return h2 @ p["w3"] + p["b3"]


if __name__ == "__main__":
    key = jax.random.PRNGKey(0)
    kx, kp = jax.random.split(key)

    batch = 8
    num_classes = 10
    x = jax.random.normal(kx, (batch, 42), jnp.float32)
    params = init_params(kp, num_classes)

    out = jax.block_until_ready(hand_sign_classifier(x, params))
    ref = reference_forward(x, params)
    assert out.shape == (batch, num_classes)
    assert jnp.allclose(out, ref, atol=1e-4, rtol=1e-4)

    # Exercise the multi-step grid + ragged last tile path:
    # B=1000, TB=256 -> 4 grid steps, 24 masked OOB rows in the last tile.
    big_B = 1000
    xb = jax.random.normal(kx, (big_B, 42), jnp.float32)
    out_b = jax.block_until_ready(hand_sign_classifier(xb, params, tb=256))
    assert out_b.shape == (big_B, num_classes)
    assert jnp.allclose(out_b, reference_forward(xb, params), atol=1e-4, rtol=1e-4)

    print("KERNEL_OK")
</pallas_src>

<mosaic_0001>
module attributes {stable_mosaic.version = 11 : i64} {
  func.func @mlp_kernel(%arg0: i32, %arg1: memref<8x42xf32, #tpu.memory_space<vmem>>, %arg2: memref<42x64xf32, #tpu.memory_space<vmem>>, %arg3: memref<1x64xf32, #tpu.memory_space<vmem>>, %arg4: memref<64x64xf32, #tpu.memory_space<vmem>>, %arg5: memref<1x64xf32, #tpu.memory_space<vmem>>, %arg6: memref<64x10xf32, #tpu.memory_space<vmem>>, %arg7: memref<1x10xf32, #tpu.memory_space<vmem>>, %arg8: memref<8x10xf32, #tpu.memory_space<vmem>>) attributes {dimension_semantics = [#tpu.dimension_semantics<parallel>], iteration_bounds = array<i64: 1>, scalar_prefetch = 0 : i64, scratch_operands = 0 : i64, tpu.core_type = #tpu.core_type<tc>, window_params = [{transform_indices = @transform_0, window_bounds = array<i64: 8, 42>}, {pipeline_mode = #tpu.pipeline_mode<synchronous>, transform_indices = @transform_1, window_bounds = array<i64: 42, 64>}, {pipeline_mode = #tpu.pipeline_mode<synchronous>, transform_indices = @transform_2, window_bounds = array<i64: 1, 64>}, {pipeline_mode = #tpu.pipeline_mode<synchronous>, transform_indices = @transform_3, window_bounds = array<i64: 64, 64>}, {pipeline_mode = #tpu.pipeline_mode<synchronous>, transform_indices = @transform_4, window_bounds = array<i64: 1, 64>}, {pipeline_mode = #tpu.pipeline_mode<synchronous>, transform_indices = @transform_5, window_bounds = array<i64: 64, 10>}, {pipeline_mode = #tpu.pipeline_mode<synchronous>, transform_indices = @transform_6, window_bounds = array<i64: 1, 10>}, {transform_indices = @transform_7, window_bounds = array<i64: 8, 10>}]} {
    %c0 = arith.constant 0 : index
    %c0_0 = arith.constant 0 : index
    %0 = vector.load %arg1[%c0, %c0_0] : memref<8x42xf32, #tpu.memory_space<vmem>>, vector<8x42xf32>
    %c0_1 = arith.constant 0 : index
    %c0_2 = arith.constant 0 : index
    %1 = vector.load %arg2[%c0_1, %c0_2] : memref<42x64xf32, #tpu.memory_space<vmem>>, vector<42x64xf32>
    %cst = arith.constant dense<0.000000e+00> : vector<8x64xf32>
    %2 = tpu.matmul %0, %1, %cst {dimension_numbers = #tpu.dot_dimension_numbers<[1], [0], [0], [1], [0, 0, 1, 1], [], []>} : vector<8x42xf32>, vector<42x64xf32>, vector<8x64xf32> -> vector<8x64xf32>
    %c0_3 = arith.constant 0 : index
    %c0_4 = arith.constant 0 : index
    %3 = vector.load %arg3[%c0_3, %c0_4] : memref<1x64xf32, #tpu.memory_space<vmem>>, vector<1x64xf32>
    %4 = vector.broadcast %3 : vector<1x64xf32> to vector<8x64xf32>
    %5 = arith.addf %2, %4 : vector<8x64xf32>
    %cst_5 = arith.constant 0.000000e+00 : f32
    %6 = vector.broadcast %cst_5 : f32 to vector<8x64xf32>
    %7 = arith.maximumf %5, %6 : vector<8x64xf32>
    %c0_6 = arith.constant 0 : index
    %c0_7 = arith.constant 0 : index
    %8 = vector.load %arg4[%c0_6, %c0_7] : memref<64x64xf32, #tpu.memory_space<vmem>>, vector<64x64xf32>
    %cst_8 = arith.constant dense<0.000000e+00> : vector<8x64xf32>
    %9 = tpu.matmul %7, %8, %cst_8 {dimension_numbers = #tpu.dot_dimension_numbers<[1], [0], [0], [1], [0, 0, 1, 1], [], []>} : vector<8x64xf32>, vector<64x64xf32>, vector<8x64xf32> -> vector<8x64xf32>
    %c0_9 = arith.constant 0 : index
    %c0_10 = arith.constant 0 : index
    %10 = vector.load %arg5[%c0_9, %c0_10] : memref<1x64xf32, #tpu.memory_space<vmem>>, vector<1x64xf32>
    %11 = vector.broadcast %10 : vector<1x64xf32> to vector<8x64xf32>
    %12 = arith.addf %9, %11 : vector<8x64xf32>
    %cst_11 = arith.constant 0.000000e+00 : f32
    %13 = vector.broadcast %cst_11 : f32 to vector<8x64xf32>
    %14 = arith.maximumf %12, %13 : vector<8x64xf32>
    %c0_12 = arith.constant 0 : index
    %c0_13 = arith.constant 0 : index
    %15 = vector.load %arg6[%c0_12, %c0_13] : memref<64x10xf32, #tpu.memory_space<vmem>>, vector<64x10xf32>
    %cst_14 = arith.constant dense<0.000000e+00> : vector<8x10xf32>
    %16 = tpu.matmul %14, %15, %cst_14 {dimension_numbers = #tpu.dot_dimension_numbers<[1], [0], [0], [1], [0, 0, 1, 1], [], []>} : vector<8x64xf32>, vector<64x10xf32>, vector<8x10xf32> -> vector<8x10xf32>
    %c0_15 = arith.constant 0 : index
    %c0_16 = arith.constant 0 : index
    %17 = vector.load %arg7[%c0_15, %c0_16] : memref<1x10xf32, #tpu.memory_space<vmem>>, vector<1x10xf32>
    %18 = vector.broadcast %17 : vector<1x10xf32> to vector<8x10xf32>
    %19 = arith.addf %16, %18 : vector<8x10xf32>
    %c0_17 = arith.constant 0 : index
    %c0_18 = arith.constant 0 : index
    %20 = vector.load %arg8[%c0_17, %c0_18] : memref<8x10xf32, #tpu.memory_space<vmem>>, vector<8x10xf32>
    tpu.vector_store %arg8[%c0_17, %c0_18], %19 {strides = array<i32>} : memref<8x10xf32, #tpu.memory_space<vmem>>, vector<8x10xf32>,
    return
  }
  func.func @transform_0(%arg0: i32) -> (i32, i32) {
    %c0_i32 = arith.constant 0 : i32
    %c0_i32_0 = arith.constant 0 : i32
    return %arg0, %c0_i32 : i32, i32
  }
  func.func @transform_1(%arg0: i32) -> (i32, i32) {
    %c0_i32 = arith.constant 0 : i32
    %c0_i32_0 = arith.constant 0 : i32
    %c0_i32_1 = arith.constant 0 : i32
    return %c0_i32, %c0_i32_0 : i32, i32
  }
  func.func @transform_2(%arg0: i32) -> (i32, i32) {
    %c0_i32 = arith.constant 0 : i32
    %c0_i32_0 = arith.constant 0 : i32
    %c0_i32_1 = arith.constant 0 : i32
    return %c0_i32, %c0_i32_0 : i32, i32
  }
  func.func @transform_3(%arg0: i32) -> (i32, i32) {
    %c0_i32 = arith.constant 0 : i32
    %c0_i32_0 = arith.constant 0 : i32
    %c0_i32_1 = arith.constant 0 : i32
    return %c0_i32, %c0_i32_0 : i32, i32
  }
  func.func @transform_4(%arg0: i32) -> (i32, i32) {
    %c0_i32 = arith.constant 0 : i32
    %c0_i32_0 = arith.constant 0 : i32
    %c0_i32_1 = arith.constant 0 : i32
    return %c0_i32, %c0_i32_0 : i32, i32
  }
  func.func @transform_5(%arg0: i32) -> (i32, i32) {
    %c0_i32 = arith.constant 0 : i32
    %c0_i32_0 = arith.constant 0 : i32
    %c0_i32_1 = arith.constant 0 : i32
    return %c0_i32, %c0_i32_0 : i32, i32
  }
  func.func @transform_6(%arg0: i32) -> (i32, i32) {
    %c0_i32 = arith.constant 0 : i32
    %c0_i32_0 = arith.constant 0 : i32
    %c0_i32_1 = arith.constant 0 : i32
    return %c0_i32, %c0_i32_0 : i32, i32
  }
  func.func @transform_7(%arg0: i32) -> (i32, i32) {
    %c0_i32 = arith.constant 0 : i32
    %c0_i32_0 = arith.constant 0 : i32
    return %arg0, %c0_i32 : i32, i32
  }
}

</mosaic_0001>

<llo_original>
// kernel: hand_sign_classifier.1
$region0: #{hand_sign_classifier.1}
  #allocation0 [shape = 'u32[]', space=smem, size = 0x4, offset = 0x4, fixed_abs, tag = 'smem constant byte address 0x4 - core index']
  #allocation1 [shape = 'u32[144,128]{1,0:T(1,128)}', space=vmem, size = 0x12000, scoped, tag = 'internal scratch']
  %s0 = inlined_call_operand.vmem [shape: f32[8,42], index: 0, kind: input, shape index: {}]
  %s1 = inlined_call_operand.hbm [shape: f32[42,64], index: 1, kind: input, shape index: {}]
  %s2 = inlined_call_operand.vmem [shape: f32[1,64], index: 2, kind: input, shape index: {}]
  %s3 = inlined_call_operand.vmem [shape: f32[64,64], index: 3, kind: input, shape index: {}]
  %s4 = inlined_call_operand.vmem [shape: f32[1,64], index: 4, kind: input, shape index: {}]
  %s5 = inlined_call_operand.vmem [shape: f32[64,10], index: 5, kind: input, shape index: {}]
  %s6 = inlined_call_operand.vmem [shape: f32[1,10], index: 6, kind: input, shape index: {}]
  %s7 = inlined_call_operand.hbm [shape: f32[8,10], index: 7, kind: output, shape index: {}]
  %s8 = sld [smem:[#allocation0]]
  $region42: #{hand_sign_classifier.1} parent=0
    _
  %s10 = ssub.s32 1, %s8
  %s11 = scalar_select 0, %s10, %s8
  $region1: #{hand_sign_classifier.1} parent=0
    #allocation2 [shape = 'u8[24576]{0}', space=vmem, size = 0x6000, scoped, tag = 'input window, operand 1, single buffered']
    #allocation3 [shape = 's32[1]{0}', space=sflag, size = 0x4, scoped, tag = 'scoped memory for hand_sign_classifier.1']
    #allocation4 [shape = 's32[1]{0}', space=sflag, size = 0x4, scoped, tag = 'scoped memory for hand_sign_classifier.1']
    #allocation5 [shape = 'u8[4096]{0}', space=vmem, size = 0x1000, scoped, tag = 'output window, operand 0, single buffered']
    %12 = vsyncpa [#allocation3], 0
    %13 = vsyncpa [#allocation4], 0
    // Predicated region
    $region2: #{hand_sign_classifier.1} parent=1 // pred_check
      _
    $region3: #{hand_sign_classifier.1} parent=1 // pred_check_branch
      %15 = sbr.rel (0) target = $region5
    $region4: #{hand_sign_classifier.1} parent=1 // pred_region
      _
    $region5: #{hand_sign_classifier.1} parent=1 // pred_fallthru
      _
    // Predicated region
    $region6: #{hand_sign_classifier.1} parent=1 // pred_check
      _
    $region7: #{hand_sign_classifier.1} parent=1 // pred_check_branch
      %17 = sbr.rel (0) target = $region9
    $region8: #{hand_sign_classifier.1} parent=1 // pred_region
      %s19 = ssub.s32 768, 768
      %20 = vsyncadd [#allocation3], %s19
      %s21 = sshll.u32 [#allocation2], 4
      %s22 = int_to_ptr.vmem [resolvable:$true] %s21
      %27 = dma.hbm_to_vmem [thread:$0]  %s1, 768, %s22, [#allocation3], 128, 128, 8
    $region9: #{hand_sign_classifier.1} parent=1 // pred_fallthru
      _
    // Predicated region
    $region10: #{hand_sign_classifier.1} parent=1 // pred_check
      _
    $region11: #{hand_sign_classifier.1} parent=1 // pred_check_branch
      %29 = sbr.rel (0) target = $region13
    $region12: #{hand_sign_classifier.1} parent=1 // pred_region
      _
    $region13: #{hand_sign_classifier.1} parent=1 // pred_fallthru
      _
    // Predicated region
    $region14: #{hand_sign_classifier.1} parent=1 // pred_check
      _
    $region15: #{hand_sign_classifier.1} parent=1 // pred_check_branch
      %31 = sbr.rel (0) target = $region17
    $region16: #{hand_sign_classifier.1} parent=1 // pred_region
      _
    $region17: #{hand_sign_classifier.1} parent=1 // pred_fallthru
      _
    // Predicated region
    $region18: #{hand_sign_classifier.1} parent=1 // pred_check
      _
    $region19: #{hand_sign_classifier.1} parent=1 // pred_check_branch
      %33 = sbr.rel (0) target = $region21
    $region20: #{hand_sign_classifier.1} parent=1 // pred_region
      _
    $region21: #{hand_sign_classifier.1} parent=1 // pred_fallthru
      _
    // Predicated region
    $region22: #{hand_sign_classifier.1} parent=1 // pred_check
      _
    $region23: #{hand_sign_classifier.1} parent=1 // pred_check_branch
      %35 = sbr.rel (0) target = $region25
    $region24: #{hand_sign_classifier.1} parent=1 // pred_region
      _
    $region25: #{hand_sign_classifier.1} parent=1 // pred_fallthru
      _
    // Predicated region
    $region26: #{hand_sign_classifier.1} parent=1 // pred_check
      _
    $region27: #{hand_sign_classifier.1} parent=1 // pred_check_branch
      %37 = sbr.rel (0) target = $region29
    $region28: #{hand_sign_classifier.1} parent=1 // pred_region
      _
    $region29: #{hand_sign_classifier.1} parent=1 // pred_fallthru
      _
    // Predicated region
    $region30: #{hand_sign_classifier.1} parent=1 // pred_check
      _
    $region31: #{hand_sign_classifier.1} parent=1 // pred_check_branch
      %39 = sbr.rel (0) target = $region33
    $region32: #{hand_sign_classifier.1} parent=1 // pred_region
      %40 = dma.done [#allocation3], 768
    $region33: #{hand_sign_classifier.1} parent=1 // pred_fallthru
      _
    %v41 = vld [vmem:[%s0] sm:$0xff]
    %v42 = vld [vmem:[#allocation2] sm:$0xff]
    %v43 = vld [vmem:[#allocation2 + $0x8] sm:$0xff]
    %v44 = vld [vmem:[#allocation2 + $0x10] sm:$0xff]
    %v45 = vld [vmem:[#allocation2 + $0x18] sm:$0xff]
    %v46 = vld [vmem:[#allocation2 + $0x20] sm:$0xff]
    %v47 = vld [vmem:[#allocation2 + $0x28] sm:$0x3]
    %v48 = vld [vmem:[%s2] sm:$0x1]
    %v50 = vlaneseq
    %v51 = vshrl.u32 %v50, 7
    %v52 = vsub.s32 0, %v51
    %v53 = vrot.slane %v48, %v52
    %vm55 = vcmask 343040
    %v57 = vsel %vm55, %v41, 0
    %vm59 = vcmask 1041408
    %v61 = vsel %vm59, %v47, 0
    %63 = vmatprep.subr.mxu0 0.0
    %64 = vmatpush1.msra.mxu0 0.0
    %65 = vmatprep.subr.mxu0 0.0
    %66 = vmatpush1.msra.mxu0 0.0
    %67 = vmatprep.subr.mxu0 0.0
    %68 = vmatpush1.msra.mxu0 0.0
    %69 = vmatprep.subr.mxu0 0.0
    %70 = vmatpush1.msra.mxu0 0.0
    %71 = vmatprep.subr.mxu0 0.0
    %72 = vmatpush1.msra.mxu0 0.0
    %73 = vmatprep.subr.mxu0 0.0
    %74 = vmatpush1.msra.mxu0 0.0
    %75 = vmatprep.subr.mxu0 0.0
    %76 = vmatpush1.msra.mxu0 0.0
    %77 = vmatprep.subr.mxu0 0.0
    %78 = vmatpush1.msra.mxu0 0.0
    %79 = vmatprep.subr.mxu0 0.0
    %80 = vmatpush1.msra.mxu0 0.0
    %81 = vmatprep.subr.mxu0 0.0
    %82 = vmatpush1.msra.mxu0 0.0
    %83 = vmatprep.subr.mxu0 0.0
    %84 = vmatpush1.msra.mxu0 %v61
    %85 = vmatprep.subr.mxu0 0.0
    %86 = vmatpush1.msra.mxu0 %v46
    %87 = vmatprep.subr.mxu0 0.0
    %88 = vmatpush1.msra.mxu0 %v45
    %89 = vmatprep.subr.mxu0 0.0
    %90 = vmatpush1.msra.mxu0 %v44
    %91 = vmatprep.subr.mxu0 0.0
    %92 = vmatpush1.msra.mxu0 %v43
    %93 = vmatprep.subr.mxu0 0.0
    %94 = vmatpush1.msra.mxu0 %v42
    %95 = vmatprep.subr.mxu0 0.0
    %96 = vmatpush2.msra.mxu0 0.0
    %97 = vmatprep.subr.mxu0 0.0
    %98 = vmatpush2.msra.mxu0 0.0
    %99 = vmatprep.subr.mxu0 0.0
    %100 = vmatpush2.msra.mxu0 0.0
    %101 = vmatprep.subr.mxu0 0.0
    %102 = vmatpush2.msra.mxu0 0.0
    %103 = vmatprep.subr.mxu0 0.0
    %104 = vmatpush2.msra.mxu0 0.0
    %105 = vmatprep.subr.mxu0 0.0
    %106 = vmatpush2.msra.mxu0 0.0
    %107 = vmatprep.subr.mxu0 0.0
    %108 = vmatpush2.msra.mxu0 0.0
    %109 = vmatprep.subr.mxu0 0.0
    %110 = vmatpush2.msra.mxu0 0.0
    %111 = vmatprep.subr.mxu0 0.0
    %112 = vmatpush2.msra.mxu0 0.0
    %113 = vmatprep.subr.mxu0 0.0
    %114 = vmatpush2.msra.mxu0 0.0
    %115 = vmatprep.subr.mxu0 0.0
    %116 = vmatpush2.msra.mxu0 0.0
    %117 = vmatprep.subr.mxu0 0.0
    %118 = vmatpush2.msra.mxu0 0.0
    %119 = vmatprep.subr.mxu0 0.0
    %120 = vmatpush2.msra.mxu0 0.0
    %121 = vmatprep.subr.mxu0 0.0
    %122 = vmatpush2.msra.mxu0 0.0
    %123 = vmatprep.subr.mxu0 0.0
    %124 = vmatpush2.msra.mxu0 0.0
    %125 = vmatprep.subr.mxu0 0.0
    %126 = vmatpush2.msra.mxu0 0.0
    %127 = vmatprep.mubr.f32.mxu0 0.0
    %128 = vmatmul.mubr.f32.gmra.mxu0 %v57
    %v129 = vpop.f32.mrf.mxu0
    %v130 = vadd.f32 %v53, %v129
    %v131 = vpop.f32.mrf.mxu0
    %132 = vdwg.mxu0
    %v133 = vmax.f32 %v130, 0.0
    %v134 = vld [vmem:[%s3] sm:$0xff]
    %v135 = vld [vmem:[%s3 + $0x8] sm:$0xff]
    %v136 = vld [vmem:[%s3 + $0x10] sm:$0xff]
    %v137 = vld [vmem:[%s3 + $0x18] sm:$0xff]
    %v138 = vld [vmem:[%s3 + $0x20] sm:$0xff]
    %v139 = vld [vmem:[%s3 + $0x28] sm:$0xff]
    %v140 = vld [vmem:[%s3 + $0x30] sm:$0xff]
    %v141 = vld [vmem:[%s3 + $0x38] sm:$0xff]
    %v142 = vld [vmem:[%s4] sm:$0x1]
    %v144 = vlaneseq
    %v145 = vshrl.u32 %v144, 7
    %v146 = vsub.s32 0, %v145
    %v147 = vrot.slane %v142, %v146
    %vm149 = vcmask 523264
    %v151 = vsel %vm149, %v133, 0
    %153 = vmatprep.subr.mxu0 0.0
    %154 = vmatpush1.msra.mxu0 0.0
    %155 = vmatprep.subr.mxu0 0.0
    %156 = vmatpush1.msra.mxu0 0.0
    %157 = vmatprep.subr.mxu0 0.0
    %158 = vmatpush1.msra.mxu0 0.0
    %159 = vmatprep.subr.mxu0 0.0
    %160 = vmatpush1.msra.mxu0 0.0
    %161 = vmatprep.subr.mxu0 0.0
    %162 = vmatpush1.msra.mxu0 0.0
    %163 = vmatprep.subr.mxu0 0.0
    %164 = vmatpush1.msra.mxu0 0.0
    %165 = vmatprep.subr.mxu0 0.0
    %166 = vmatpush1.msra.mxu0 0.0
    %167 = vmatprep.subr.mxu0 0.0
    %168 = vmatpush1.msra.mxu0 0.0
    %169 = vmatprep.subr.mxu0 0.0
    %170 = vmatpush1.msra.mxu0 %v141
    %171 = vmatprep.subr.mxu0 0.0
    %172 = vmatpush1.msra.mxu0 %v140
    %173 = vmatprep.subr.mxu0 0.0
    %174 = vmatpush1.msra.mxu0 %v139
    %175 = vmatprep.subr.mxu0 0.0
    %176 = vmatpush1.msra.mxu0 %v138
    %177 = vmatprep.subr.mxu0 0.0
    %178 = vmatpush1.msra.mxu0 %v137
    %179 = vmatprep.subr.mxu0 0.0
    %180 = vmatpush1.msra.mxu0 %v136
    %181 = vmatprep.subr.mxu0 0.0
    %182 = vmatpush1.msra.mxu0 %v135
    %183 = vmatprep.subr.mxu0 0.0
    %184 = vmatpush1.msra.mxu0 %v134
    %185 = vmatprep.subr.mxu0 0.0
    %186 = vmatpush2.msra.mxu0 0.0
    %187 = vmatprep.subr.mxu0 0.0
    %188 = vmatpush2.msra.mxu0 0.0
    %189 = vmatprep.subr.mxu0 0.0
    %190 = vmatpush2.msra.mxu0 0.0
    %191 = vmatprep.subr.mxu0 0.0
    %192 = vmatpush2.msra.mxu0 0.0
    %193 = vmatprep.subr.mxu0 0.0
    %194 = vmatpush2.msra.mxu0 0.0
    %195 = vmatprep.subr.mxu0 0.0
    %196 = vmatpush2.msra.mxu0 0.0
    %197 = vmatprep.subr.mxu0 0.0
    %198 = vmatpush2.msra.mxu0 0.0
    %199 = vmatprep.subr.mxu0 0.0
    %200 = vmatpush2.msra.mxu0 0.0
    %201 = vmatprep.subr.mxu0 0.0
    %202 = vmatpush2.msra.mxu0 0.0
    %203 = vmatprep.subr.mxu0 0.0
    %204 = vmatpush2.msra.mxu0 0.0
    %205 = vmatprep.subr.mxu0 0.0
    %206 = vmatpush2.msra.mxu0 0.0
    %207 = vmatprep.subr.mxu0 0.0
    %208 = vmatpush2.msra.mxu0 0.0
    %209 = vmatprep.subr.mxu0 0.0
    %210 = vmatpush2.msra.mxu0 0.0
    %211 = vmatprep.subr.mxu0 0.0
    %212 = vmatpush2.msra.mxu0 0.0
    %213 = vmatprep.subr.mxu0 0.0
    %214 = vmatpush2.msra.mxu0 0.0
    %215 = vmatprep.subr.mxu0 0.0
    %216 = vmatpush2.msra.mxu0 0.0
    %217 = vmatprep.mubr.f32.mxu0 0.0
    %218 = vmatmul.mubr.f32.gmra.mxu0 %v151
    %v219 = vpop.f32.mrf.mxu0
    %v220 = vadd.f32 %v147, %v219
    %v221 = vpop.f32.mrf.mxu0
    %222 = vdwg.mxu0
    %v223 = vmax.f32 %v220, 0.0
    %v224 = vld [vmem:[%s5] sm:$0xff]
    %v225 = vld [vmem:[%s5 + $0x8] sm:$0xff]
    %v226 = vld [vmem:[%s5 + $0x10] sm:$0xff]
    %v227 = vld [vmem:[%s5 + $0x18] sm:$0xff]
    %v228 = vld [vmem:[%s5 + $0x20] sm:$0xff]
    %v229 = vld [vmem:[%s5 + $0x28] sm:$0xff]
    %v230 = vld [vmem:[%s5 + $0x30] sm:$0xff]
    %v231 = vld [vmem:[%s5 + $0x38] sm:$0xff]
    %v232 = vld [vmem:[%s6] sm:$0x1]
    %v234 = vlaneseq
    %v235 = vshrl.u32 %v234, 7
    %v236 = vsub.s32 0, %v235
    %v237 = vrot.slane %v232, %v236
    %v240 = vsel %vm149, %v223, 0
    %242 = vmatprep.subr.mxu0 0.0
    %243 = vmatpush1.msra.mxu0 0.0
    %244 = vmatprep.subr.mxu0 0.0
    %245 = vmatpush1.msra.mxu0 0.0
    %246 = vmatprep.subr.mxu0 0.0
    %247 = vmatpush1.msra.mxu0 0.0
    %248 = vmatprep.subr.mxu0 0.0
    %249 = vmatpush1.msra.mxu0 0.0
    %250 = vmatprep.subr.mxu0 0.0
    %251 = vmatpush1.msra.mxu0 0.0
    %252 = vmatprep.subr.mxu0 0.0
    %253 = vmatpush1.msra.mxu0 0.0
    %254 = vmatprep.subr.mxu0 0.0
    %255 = vmatpush1.msra.mxu0 0.0
    %256 = vmatprep.subr.mxu0 0.0
    %257 = vmatpush1.msra.mxu0 0.0
    %258 = vmatprep.subr.mxu0 0.0
    %259 = vmatpush1.msra.mxu0 %v231
    %260 = vmatprep.subr.mxu0 0.0
    %261 = vmatpush1.msra.mxu0 %v230
    %262 = vmatprep.subr.mxu0 0.0
    %263 = vmatpush1.msra.mxu0 %v229
    %264 = vmatprep.subr.mxu0 0.0
    %265 = vmatpush1.msra.mxu0 %v228
    %266 = vmatprep.subr.mxu0 0.0
    %267 = vmatpush1.msra.mxu0 %v227
    %268 = vmatprep.subr.mxu0 0.0
    %269 = vmatpush1.msra.mxu0 %v226
    %270 = vmatprep.subr.mxu0 0.0
    %271 = vmatpush1.msra.mxu0 %v225
    %272 = vmatprep.subr.mxu0 0.0
    %273 = vmatpush1.msra.mxu0 %v224
    %274 = vmatprep.subr.mxu0 0.0
    %275 = vmatpush2.msra.mxu0 0.0
    %276 = vmatprep.subr.mxu0 0.0
    %277 = vmatpush2.msra.mxu0 0.0
    %278 = vmatprep.subr.mxu0 0.0
    %279 = vmatpush2.msra.mxu0 0.0
    %280 = vmatprep.subr.mxu0 0.0
    %281 = vmatpush2.msra.mxu0 0.0
    %282 = vmatprep.subr.mxu0 0.0
    %283 = vmatpush2.msra.mxu0 0.0
    %284 = vmatprep.subr.mxu0 0.0
    %285 = vmatpush2.msra.mxu0 0.0
    %286 = vmatprep.subr.mxu0 0.0
    %287 = vmatpush2.msra.mxu0 0.0
    %288 = vmatprep.subr.mxu0 0.0
    %289 = vmatpush2.msra.mxu0 0.0
    %290 = vmatprep.subr.mxu0 0.0
    %291 = vmatpush2.msra.mxu0 0.0
    %292 = vmatprep.subr.mxu0 0.0
    %293 = vmatpush2.msra.mxu0 0.0
    %294 = vmatprep.subr.mxu0 0.0
    %295 = vmatpush2.msra.mxu0 0.0
    %296 = vmatprep.subr.mxu0 0.0
    %297 = vmatpush2.msra.mxu0 0.0
    %298 = vmatprep.subr.mxu0 0.0
    %299 = vmatpush2.msra.mxu0 0.0
    %300 = vmatprep.subr.mxu0 0.0
    %301 = vmatpush2.msra.mxu0 0.0
    %302 = vmatprep.subr.mxu0 0.0
    %303 = vmatpush2.msra.mxu0 0.0
    %304 = vmatprep.subr.mxu0 0.0
    %305 = vmatpush2.msra.mxu0 0.0
    %306 = vmatprep.mubr.f32.mxu0 0.0
    %307 = vmatmul.mubr.f32.gmra.mxu0 %v240
    %v308 = vpop.f32.mrf.mxu0
    %v309 = vadd.f32 %v237, %v308
    %v310 = vpop.f32.mrf.mxu0
    %311 = vdwg.mxu0
    %vm312 = vcmask 80896
    %313 = vst.msk [vmem:[#allocation5] sm:$0xff] %vm312, %v309
    // Predicated region
    $region34: #{hand_sign_classifier.1} parent=1 // pred_check
      _
    $region35: #{hand_sign_classifier.1} parent=1 // pred_check_branch
      %315 = sbr.rel (0) target = $region37
    $region36: #{hand_sign_classifier.1} parent=1 // pred_region
      %s317 = ssub.s32 128, 128
      %318 = vsyncadd [#allocation4], %s317
      %s320 = sshll.u32 [#allocation5], 4
      %s321 = int_to_ptr.vmem [resolvable:$true] %s320
      %323 = dma.vmem_to_hbm [thread:$0]  %s321, 128, %s7, [#allocation4]
    $region37: #{hand_sign_classifier.1} parent=1 // pred_fallthru
      _
    // Predicated region
    $region38: #{hand_sign_classifier.1} parent=1 // pred_check
      _
    $region39: #{hand_sign_classifier.1} parent=1 // pred_check_branch
      %325 = sbr.rel (0) target = $region41
    $region40: #{hand_sign_classifier.1} parent=1 // pred_region
      %326 = dma.done [#allocation4], 128
    $region41: #{hand_sign_classifier.1} parent=1 // pred_fallthru
      _
    %327 = vsyncpa [#allocation3], 1
    %328 = vsyncpa [#allocation4], 1

</llo_original>
